<compile_context>
chip_gen: v5e
topology: v5e:2x2
jax: 0.10.0
libtpu: 0.0.40
codegen_flags: <defaults>
</compile_context>

<pallas_src>
import jax
import jax.numpy as jnp
from jax.experimental import pallas as pl
from jax.experimental.pallas import tpu as pltpu


def _round_up(a: int, m: int) -> int:
    return -(-a // m) * m


def _pairwise_interaction_kernel(x_ref, sel_ref, o_ref):
    # x_ref:   (tb, F*D) block in VMEM, native HBM dtype (f32 or bf16).
    # sel_ref: (F*D, Dp) constant selector, sel[f*D + d, d] = 1, else 0.
    # o_ref:   (tb, 1) float32 output block.
    x = x_ref[...]

    # Field sum per embedding dim on the MXU (f32 accumulation):
    #   s[b, d] = sum_f x[b, f, d]                         -> (tb, Dp)
    s = jnp.dot(x, sel_ref[...], preferred_element_type=jnp.float32)
    square_of_sum = jnp.sum(s * s, axis=1, keepdims=True)          # (tb, 1)

    # sum_{f,d} x[b, f, d]^2 as a flat lane reduce; square + accumulate in f32.
    x32 = x.astype(jnp.float32)
    sum_of_square = jnp.sum(x32 * x32, axis=1, keepdims=True)      # (tb, 1)

    o_ref[...] = (0.5 * (square_of_sum - sum_of_square)).astype(o_ref.dtype)


def _per_buffer_budget_bytes() -> int:
    """Real bytes of input per grid step, derived from the chip's VMEM size."""
    try:
        vmem_bytes = pltpu.get_tpu_info().vmem_capacity_bytes
    except Exception:
        vmem_bytes = 64 << 20  # conservative (v7x-sized) fallback
    # Total plan ~= 2 x double-buffered input + selector + f32 temps.
    # Keep the plan comfortably under half of physical VMEM.
    budget = (vmem_bytes // 2 - (4 << 20)) // 2
    return max(6 << 20, min(16 << 20, budget))


def _choose_batch_tile(B: int, FD: int, dtype, budget: int) -> int:
    """Pick the batch tile from a real-byte VMEM budget (lane-padded F*D)."""
    if B <= 8:
        # Output block's 2nd-to-last dim must be a multiple of 8 or the full
        # extent; for tiny batches just take the full extent.
        return B
    itemsize = jnp.dtype(dtype).itemsize
    sub_mult = 8 * max(1, 4 // itemsize)       # packed sublane multiple (bf16=16)
    padded_fd = _round_up(FD, 128)             # lane padding of the last dim
    tb = budget // (padded_fd * itemsize)
    # Keep >= 2 grid steps so v7x's two TensorCores both get work on the
    # "parallel" batch axis (no-op on single-TC v5e/v6e).
    half = _round_up(-(-B // 2), sub_mult)
    tb = min(tb, half, B)
    tb = max(8, (tb // 8) * 8)
    return tb


def pairwise_interaction(x: jax.Array) -> jax.Array:
    """x: (batch, num_fields, embedding_dim) -> (batch, 1) float32."""
    B, F, D = x.shape
    FD = F * D
    Dp = _round_up(D, 128)

    # Free layout change: (B, F, D) is contiguous in HBM, so (B, F*D) is the
    # same bytes presented lane-dense to the kernel.
    x_flat = x.reshape(B, FD)

    # Constant selector: sel[f*D + d, c] = 1 iff c == d (c < D), 0 otherwise.
    rows = jnp.arange(FD, dtype=jnp.int32) % D
    cols = jnp.arange(Dp, dtype=jnp.int32)
    sel = (rows[:, None] == cols[None, :]).astype(x.dtype)

    budget = _per_buffer_budget_bytes()
    tb = _choose_batch_tile(B, FD, x.dtype, budget)
    grid = (pl.cdiv(B, tb),)

    # Cover the double-buffered input plan plus temps; stays under v7x's
    # 64 MiB physical VMEM and well under v5e/v6e's 128 MiB.
    vmem_limit = min(100 << 20, 2 * budget + (16 << 20))

    cost = pl.CostEstimate(
        flops=2 * B * FD * Dp + 4 * B * FD,
        transcendentals=0,
        bytes_accessed=x.size * x.dtype.itemsize
        + sel.size * sel.dtype.itemsize
        + B * 4,
    )

    return pl.pallas_call(
        _pairwise_interaction_kernel,
        out_shape=jax.ShapeDtypeStruct((B, 1), jnp.float32),
        grid=grid,
        in_specs=[
            pl.BlockSpec((tb, FD), lambda i: (i, 0)),   # lane-dense, contiguous
            pl.BlockSpec((FD, Dp), lambda i: (0, 0)),   # tiny constant selector
        ],
        out_specs=pl.BlockSpec((tb, 1), lambda i: (i, 0)),
        compiler_params=pltpu.CompilerParams(
            dimension_semantics=("parallel",),
            vmem_limit_bytes=vmem_limit,
        ),
        cost_estimate=cost,
    )(x_flat, sel)


def _reference(x: jax.Array) -> jax.Array:
    square_of_sum = jnp.sum(x, axis=1) ** 2
    sum_of_square = jnp.sum(x ** 2, axis=1)
    y = 0.5 * (square_of_sum - sum_of_square)
    return jnp.sum(y, axis=1, keepdims=True)


if __name__ == "__main__":
    key = jax.random.PRNGKey(0)

    # Small shape matching the module spec: (batch, num_fields, embedding_dim).
    batch, num_fields, embedding_dim = 2, 4, 16
    x = jax.random.normal(key, (batch, num_fields, embedding_dim), dtype=jnp.float32)

    out = pairwise_interaction(x)
    jax.block_until_ready(out)

    ref = _reference(x)
    assert out.shape == (batch, 1), out.shape
    assert jnp.allclose(out, ref, atol=1e-5, rtol=1e-5), (out, ref)

    # Exercise the tiled path: large batch, uneven tail tile, bf16 HBM dtype.
    B2 = 1000
    x2 = jax.random.normal(jax.random.PRNGKey(1), (B2, num_fields, embedding_dim),
                           dtype=jnp.float32).astype(jnp.bfloat16)
    out2 = pairwise_interaction(x2)
    jax.block_until_ready(out2)
    ref2 = _reference(x2.astype(jnp.float32))
    assert out2.shape == (B2, 1), out2.shape
    assert jnp.allclose(out2, ref2, atol=1e-2, rtol=1e-2), \
        float(jnp.max(jnp.abs(out2 - ref2)))

    print("KERNEL_OK")
</pallas_src>

<mosaic_0001>
module attributes {stable_mosaic.version = 11 : i64} {
  func.func @_pairwise_interaction_kernel(%arg0: i32, %arg1: memref<2x64xf32, #tpu.memory_space<vmem>>, %arg2: memref<64x128xf32, #tpu.memory_space<vmem>>, %arg3: memref<2x1xf32, #tpu.memory_space<vmem>>) attributes {dimension_semantics = [#tpu.dimension_semantics<parallel>], iteration_bounds = array<i64: 1>, scalar_prefetch = 0 : i64, scratch_operands = 0 : i64, tpu.core_type = #tpu.core_type<tc>, window_params = [{transform_indices = @transform_0, window_bounds = array<i64: 2, 64>}, {pipeline_mode = #tpu.pipeline_mode<synchronous>, transform_indices = @transform_1, window_bounds = array<i64: 64, 128>}, {transform_indices = @transform_2, window_bounds = array<i64: 2, 1>}]} {
    %c0 = arith.constant 0 : index
    %c0_0 = arith.constant 0 : index
    %0 = vector.load %arg1[%c0, %c0_0] : memref<2x64xf32, #tpu.memory_space<vmem>>, vector<2x64xf32>
    %c0_1 = arith.constant 0 : index
    %c0_2 = arith.constant 0 : index
    %1 = vector.load %arg2[%c0_1, %c0_2] : memref<64x128xf32, #tpu.memory_space<vmem>>, vector<64x128xf32>
    %cst = arith.constant dense<0.000000e+00> : vector<2x128xf32>
    %2 = tpu.matmul %0, %1, %cst {dimension_numbers = #tpu.dot_dimension_numbers<[1], [0], [0], [1], [0, 0, 1, 1], [], []>} : vector<2x64xf32>, vector<64x128xf32>, vector<2x128xf32> -> vector<2x128xf32>
    %3 = arith.mulf %2, %2 : vector<2x128xf32>
    %cst_3 = arith.constant dense<0.000000e+00> : vector<2xf32>
    %4 = vector.multi_reduction <add>, %3, %cst_3 [1] : vector<2x128xf32> to vector<2xf32>
    %5 = vector.shape_cast %4 : vector<2xf32> to vector<2x1xf32>
    %6 = arith.mulf %0, %0 : vector<2x64xf32>
    %cst_4 = arith.constant dense<0.000000e+00> : vector<2xf32>
    %7 = vector.multi_reduction <add>, %6, %cst_4 [1] : vector<2x64xf32> to vector<2xf32>
    %8 = vector.shape_cast %7 : vector<2xf32> to vector<2x1xf32>
    %9 = arith.subf %5, %8 : vector<2x1xf32>
    %cst_5 = arith.constant 5.000000e-01 : f32
    %10 = vector.broadcast %cst_5 : f32 to vector<2x1xf32>
    %11 = arith.mulf %10, %9 : vector<2x1xf32>
    %c0_6 = arith.constant 0 : index
    %c0_7 = arith.constant 0 : index
    %12 = vector.load %arg3[%c0_6, %c0_7] : memref<2x1xf32, #tpu.memory_space<vmem>>, vector<2x1xf32>
    tpu.vector_store %arg3[%c0_6, %c0_7], %11 {strides = array<i32>} : memref<2x1xf32, #tpu.memory_space<vmem>>, vector<2x1xf32>,
    return
  }
  func.func @transform_0(%arg0: i32) -> (i32, i32) {
    %c0_i32 = arith.constant 0 : i32
    %c0_i32_0 = arith.constant 0 : i32
    return %arg0, %c0_i32 : i32, i32
  }
  func.func @transform_1(%arg0: i32) -> (i32, i32) {
    %c0_i32 = arith.constant 0 : i32
    %c0_i32_0 = arith.constant 0 : i32
    %c0_i32_1 = arith.constant 0 : i32
    return %c0_i32, %c0_i32_0 : i32, i32
  }
  func.func @transform_2(%arg0: i32) -> (i32, i32) {
    %c0_i32 = arith.constant 0 : i32
    %c0_i32_0 = arith.constant 0 : i32
    return %arg0, %c0_i32 : i32, i32
  }
}

</mosaic_0001>

<llo_original>
// kernel: tpu_custom_call.1
$region0: #{tpu_custom_call.1}
  #allocation0 [shape = 'u32[]', space=smem, size = 0x4, offset = 0x4, fixed_abs, tag = 'smem constant byte address 0x4 - core index']
  #allocation1 [shape = 'u32[72,128]{1,0:T(1,128)}', space=vmem, size = 0x9000, scoped, tag = 'internal scratch']
  %s0 = inlined_call_operand.hbm [shape: f32[2,64], index: 0, kind: input, shape index: {}]
  %s1 = inlined_call_operand.hbm [shape: f32[64,128], index: 1, kind: input, shape index: {}]
  %s2 = inlined_call_operand.vmem [shape: f32[2,1], index: 2, kind: output, shape index: {}]
  %s3 = sld [smem:[#allocation0]]
  $region26: #{tpu_custom_call.1} parent=0
    _
  %s5 = ssub.s32 1, %s3
  %s6 = scalar_select 0, %s5, %s3
  $region1: #{tpu_custom_call.1} parent=0
    #allocation2 [shape = 'u8[1024]{0}', space=vmem, size = 0x400, scoped, tag = 'input window, operand 0, single buffered']
    #allocation3 [shape = 's32[1]{0}', space=sflag, size = 0x4, scoped, tag = 'scoped memory for tpu_custom_call.1']
    #allocation4 [shape = 'u8[32768]{0}', space=vmem, size = 0x8000, scoped, tag = 'input window, operand 1, single buffered']
    #allocation5 [shape = 's32[1]{0}', space=sflag, size = 0x4, scoped, tag = 'scoped memory for tpu_custom_call.1']
    %7 = vsyncpa [#allocation3], 0
    %8 = vsyncpa [#allocation5], 0
    // Predicated region
    $region2: #{tpu_custom_call.1} parent=1 // pred_check
      _
    $region3: #{tpu_custom_call.1} parent=1 // pred_check_branch
      %10 = sbr.rel (0) target = $region5
    $region4: #{tpu_custom_call.1} parent=1 // pred_region
      %12 = vsyncadd [#allocation3], 0
      %s14 = sshll.u32 %s0, 4
      %s15 = int_to_ptr.hbm [resolvable:$true] %s14
      %s16 = sshll.u32 [#allocation2], 4
      %s17 = int_to_ptr.vmem [resolvable:$true] %s16
      %19 = dma.hbm_to_vmem [thread:$0]  %s15, 32, %s17, [#allocation3]
    $region5: #{tpu_custom_call.1} parent=1 // pred_fallthru
      _
    // Predicated region
    $region6: #{tpu_custom_call.1} parent=1 // pred_check
      _
    $region7: #{tpu_custom_call.1} parent=1 // pred_check_branch
      %21 = sbr.rel (0) target = $region9
    $region8: #{tpu_custom_call.1} parent=1 // pred_region
      %23 = vsyncadd [#allocation5], 0
      %s24 = sshll.u32 %s1, 4
      %s25 = int_to_ptr.hbm [resolvable:$true] %s24
      %s26 = sshll.u32 [#allocation4], 4
      %s27 = int_to_ptr.vmem [resolvable:$true] %s26
      %32 = dma.hbm_to_vmem [thread:$0]  %s25, 1024, %s27, [#allocation5], 128, 128, 8
    $region9: #{tpu_custom_call.1} parent=1 // pred_fallthru
      _
    // Predicated region
    $region10: #{tpu_custom_call.1} parent=1 // pred_check
      _
    $region11: #{tpu_custom_call.1} parent=1 // pred_check_branch
      %34 = sbr.rel (0) target = $region13
    $region12: #{tpu_custom_call.1} parent=1 // pred_region
      %36 = dma.done [#allocation3], 32
    $region13: #{tpu_custom_call.1} parent=1 // pred_fallthru
      _
    // Predicated region
    $region14: #{tpu_custom_call.1} parent=1 // pred_check
      _
    $region15: #{tpu_custom_call.1} parent=1 // pred_check_branch
      %38 = sbr.rel (0) target = $region17
    $region16: #{tpu_custom_call.1} parent=1 // pred_region
      %40 = dma.done [#allocation5], 1024
    $region17: #{tpu_custom_call.1} parent=1 // pred_fallthru
      _
    %v41 = vld [vmem:[#allocation2] sm:$0x3]
    %v42 = vld [vmem:[#allocation4] sm:$0xff]
    %v43 = vld [vmem:[#allocation4 + $0x8] sm:$0xff]
    %v44 = vld [vmem:[#allocation4 + $0x10] sm:$0xff]
    %v45 = vld [vmem:[#allocation4 + $0x18] sm:$0xff]
    %v46 = vld [vmem:[#allocation4 + $0x20] sm:$0xff]
    %v47 = vld [vmem:[#allocation4 + $0x28] sm:$0xff]
    %v48 = vld [vmem:[#allocation4 + $0x30] sm:$0xff]
    %v49 = vld [vmem:[#allocation4 + $0x38] sm:$0xff]
    %vm50 = vcmask 523264
    %v52 = vsel %vm50, %v41, 0
    %54 = vmatpush.msra.mxu0 0.0
    %55 = vmatpush.msra.mxu0 0.0
    %56 = vmatpush.msra.mxu0 0.0
    %57 = vmatpush.msra.mxu0 0.0
    %58 = vmatpush.msra.mxu0 0.0
    %59 = vmatpush.msra.mxu0 0.0
    %60 = vmatpush.msra.mxu0 0.0
    %61 = vmatpush.msra.mxu0 0.0
    %62 = vmatpush.msra.mxu0 %v49
    %63 = vmatpush.msra.mxu0 %v48
    %64 = vmatpush.msra.mxu0 %v47
    %65 = vmatpush.msra.mxu0 %v46
    %66 = vmatpush.msra.mxu0 %v45
    %67 = vmatpush.msra.mxu0 %v44
    %68 = vmatpush.msra.mxu0 %v43
    %69 = vmatpush.msra.mxu0 %v42
    %70 = vmatmul.f32.gmra.mxu0 %v52
    %v71 = vpop.f32.mrf.mxu0
    %v72 = vadd.f32 0.0, %v71
    %73 = vdwg.mxu0
    %v74 = vmul.f32 %v72, %v72
    %vm75 = vcmask 1041408
    %v76 = vsel %vm75, %v74, 0.0
    %77 = vadd.xlane.f32.xlu0 %v76
    %v78 = vpop.xlane.xlu0 %77
    %v79 = vmul.f32 %v41, %v41
    %vm80 = vcmask 517120
    %v81 = vsel %vm80, %v79, 0.0
    %82 = vadd.xlane.f32.xlu0 %v81
    %v83 = vpop.xlane.xlu0 %82
    %v84 = vsub.f32 %v78, %v83
    %v85 = vmul.f32 %v84, 0.5
    %vm86 = vcmask 1024
    %87 = vst.msk [vmem:[%s2] sm:$0x3] %vm86, %v85
    // Predicated region
    $region18: #{tpu_custom_call.1} parent=1 // pred_check
      _
    $region19: #{tpu_custom_call.1} parent=1 // pred_check_branch
      %89 = sbr.rel (0) target = $region21
    $region20: #{tpu_custom_call.1} parent=1 // pred_region
      _
    $region21: #{tpu_custom_call.1} parent=1 // pred_fallthru
      _
    // Predicated region
    $region22: #{tpu_custom_call.1} parent=1 // pred_check
      _
    $region23: #{tpu_custom_call.1} parent=1 // pred_check_branch
      %91 = sbr.rel (0) target = $region25
    $region24: #{tpu_custom_call.1} parent=1 // pred_region
      _
    $region25: #{tpu_custom_call.1} parent=1 // pred_fallthru
      _
    %92 = vsyncpa [#allocation3], 1
    %93 = vsyncpa [#allocation5], 1

</llo_original>
